<compile_context>
chip_gen: v7x
topology: tpu7x:2x2x1
jax: 0.10.0
libtpu: 0.0.40
codegen_flags: <defaults>
</compile_context>

<pallas_src>
import functools

import jax
import jax.numpy as jnp
from jax.experimental import pallas as pl
from jax.experimental.pallas import tpu as pltpu

_BLOCK_BUDGET_BYTES = 4 * 1024 * 1024    # target bytes per (double-buffered) block
_VMEM_LIMIT_BYTES = 32 * 1024 * 1024


def _excite(y, w1, w2):
    """Tiny 2-layer FC gate on the VPU/XLU (skip the MXU). y: (Bt, C) f32."""
    # h[b, j] = relu( sum_c y[b, c] * w1[j, c] )   -> lane reduce over C
    h = jnp.maximum(jnp.sum(y[:, None, :] * w1[None, :, :], axis=-1), 0.0)   # (Bt, Cr)
    # z[b, c] = sum_j h[b, j] * w2[c, j]           -> lane reduce over Cr
    z = jnp.sum(h[:, None, :] * w2[None, :, :], axis=-1)                     # (Bt, C)
    return jax.nn.sigmoid(z)                                                  # (Bt, C)


def _se_single_pass_kernel(x_ref, w1_ref, w2_ref, o_ref):
    # x_ref: (Bt, C, L); w1_ref: (Cr, C); w2_ref: (C, Cr)  (PyTorch Linear layout)
    x = x_ref[...]                                            # input dtype
    y = jnp.mean(x.astype(jnp.float32), axis=-1)              # (Bt, C) squeeze
    gate = _excite(y, w1_ref[...].astype(jnp.float32),
                   w2_ref[...].astype(jnp.float32))           # (Bt, C)
    o_ref[...] = (x * gate[:, :, None].astype(x.dtype)).astype(o_ref.dtype)


def _se_two_pass_kernel(x_ref, w1_ref, w2_ref, o_ref, sum_ref, gate_ref, *, inv_len):
    # Grid: (batch, phase, L tiles). Phase 0: pool; phase 1: apply gate.
    p = pl.program_id(1)
    l = pl.program_id(2)
    nl = pl.num_programs(2)

    @pl.when((p == 0) & (l == 0))
    def _():
        sum_ref[...] = jnp.zeros_like(sum_ref)

    @pl.when(p == 0)
    def _():
        sum_ref[...] += jnp.sum(x_ref[...].astype(jnp.float32), axis=-1)

    @pl.when((p == 0) & (l == nl - 1))
    def _():
        y = sum_ref[...] * inv_len                            # (1, C) mean
        gate_ref[...] = _excite(y, w1_ref[...].astype(jnp.float32),
                                w2_ref[...].astype(jnp.float32))

    @pl.when(p == 1)
    def _():
        x = x_ref[...]
        gate = gate_ref[...][:, :, None].astype(x.dtype)
        o_ref[...] = (x * gate).astype(o_ref.dtype)


def _largest_divisor_within(n, cap):
    best = 1
    for d in range(1, n + 1):
        if n % d == 0 and d <= cap:
            best = d
    return best


def se_layer(x, w1, w2, *, block_budget_bytes=_BLOCK_BUDGET_BYTES,
             force_two_pass=False, l_tile=None):
    """x: (B, C, L) NCL. w1: (C//r, C), w2: (C, C//r) (PyTorch nn.Linear layout)."""
    B, C, L = x.shape
    Cr = w1.shape[0]
    assert w1.shape == (Cr, C) and w2.shape == (C, Cr)
    isize = jnp.dtype(x.dtype).itemsize
    per_sample_bytes = C * L * isize

    if per_sample_bytes <= block_budget_bytes and not force_two_pass:
        # --- Single pass: whole (C, L) per sample resident, 1 read + 1 write ---
        b_cap = max(1, block_budget_bytes // per_sample_bytes)
        b_tile = _largest_divisor_within(B, b_cap)
        return pl.pallas_call(
            _se_single_pass_kernel,
            out_shape=jax.ShapeDtypeStruct((B, C, L), x.dtype),
            grid=(B // b_tile,),
            in_specs=[
                pl.BlockSpec((b_tile, C, L), lambda b: (b, 0, 0)),
                pl.BlockSpec((Cr, C), lambda b: (0, 0)),
                pl.BlockSpec((C, Cr), lambda b: (0, 0)),
            ],
            out_specs=pl.BlockSpec((b_tile, C, L), lambda b: (b, 0, 0)),
            compiler_params=pltpu.CompilerParams(
                dimension_semantics=("parallel",),
                vmem_limit_bytes=_VMEM_LIMIT_BYTES,
            ),
        )(x, w1, w2)

    # --- Two-pass fallback for large L: pool over L tiles, then apply gate ---
    if l_tile is None:
        cands = [d for d in range(128, L + 1, 128) if L % d == 0] or [L]
        fitting = [d for d in cands if C * d * isize <= block_budget_bytes]
        l_tile = max(fitting) if fitting else min(cands)
    assert L % l_tile == 0
    n_l = L // l_tile

    kernel = functools.partial(_se_two_pass_kernel, inv_len=1.0 / float(L))
    return pl.pallas_call(
        kernel,
        out_shape=jax.ShapeDtypeStruct((B, C, L), x.dtype),
        grid=(B, 2, n_l),
        in_specs=[
            pl.BlockSpec((1, C, l_tile), lambda b, p, l: (b, 0, l)),
            pl.BlockSpec((Cr, C), lambda b, p, l: (0, 0)),
            pl.BlockSpec((C, Cr), lambda b, p, l: (0, 0)),
        ],
        # Phase 0 never writes the output: pin its output index to tile 0 so no
        # garbage block is ever flushed (phase 1 revisits and writes tile 0 first).
        out_specs=pl.BlockSpec((1, C, l_tile), lambda b, p, l: (b, 0, l * p)),
        scratch_shapes=[
            pltpu.VMEM((1, C), jnp.float32),   # running sum over L
            pltpu.VMEM((1, C), jnp.float32),   # sigmoid gate
        ],
        compiler_params=pltpu.CompilerParams(
            dimension_semantics=("parallel", "arbitrary", "arbitrary"),
            vmem_limit_bytes=_VMEM_LIMIT_BYTES,
        ),
    )(x, w1, w2)


def se_layer_reference(x, w1, w2):
    """Pure-JAX reference matching the PyTorch SELayer forward."""
    y = jnp.mean(x.astype(jnp.float32), axis=-1)              # (B, C)
    h = jnp.maximum(y @ w1.T, 0.0)                            # (B, Cr)
    g = jax.nn.sigmoid(h @ w2.T)                              # (B, C)
    return (x * g[:, :, None].astype(x.dtype)).astype(x.dtype)


if __name__ == "__main__":
    REDUCTION = 16

    key = jax.random.PRNGKey(0)
    kx, k1, k2, kx2 = jax.random.split(key, 4)

    # Case 1: single-pass path (small shapes, whole sample resident in VMEM).
    B, C, L = 2, 32, 128
    Cr = C // REDUCTION
    x = jax.random.normal(kx, (B, C, L), jnp.float32)
    # Weights in native PyTorch nn.Linear layout (out_features, in_features).
    w1 = jax.random.normal(k1, (Cr, C), jnp.float32) * (1.0 / C ** 0.5)
    w2 = jax.random.normal(k2, (C, Cr), jnp.float32) * (1.0 / Cr ** 0.5)

    out = jax.block_until_ready(se_layer(x, w1, w2))
    ref = se_layer_reference(x, w1, w2)
    assert out.shape == (B, C, L), out.shape
    assert jnp.allclose(out, ref, atol=1e-5, rtol=1e-5), float(
        jnp.max(jnp.abs(out - ref)))

    # Case 2: two-pass (length-tiled) path, forced to exercise the large-L fallback.
    L2 = 256
    x2 = jax.random.normal(kx2, (B, C, L2), jnp.float32)
    out2 = jax.block_until_ready(se_layer(x2, w1, w2, force_two_pass=True, l_tile=128))
    ref2 = se_layer_reference(x2, w1, w2)
    assert out2.shape == (B, C, L2), out2.shape
    assert jnp.allclose(out2, ref2, atol=1e-5, rtol=1e-5), float(
        jnp.max(jnp.abs(out2 - ref2)))

    print("KERNEL_OK")
</pallas_src>

<mosaic_0001>
module attributes {stable_mosaic.version = 11 : i64} {
  func.func @_se_single_pass_kernel(%arg0: i32, %arg1: memref<2x32x128xf32, #tpu.memory_space<vmem>>, %arg2: memref<2x32xf32, #tpu.memory_space<vmem>>, %arg3: memref<32x2xf32, #tpu.memory_space<vmem>>, %arg4: memref<2x32x128xf32, #tpu.memory_space<vmem>>) attributes {dimension_semantics = [#tpu.dimension_semantics<parallel>], iteration_bounds = array<i64: 1>, scalar_prefetch = 0 : i64, scratch_operands = 0 : i64, tpu.core_type = #tpu.core_type<tc>, window_params = [{transform_indices = @transform_0, window_bounds = array<i64: 2, 32, 128>}, {pipeline_mode = #tpu.pipeline_mode<synchronous>, transform_indices = @transform_1, window_bounds = array<i64: 2, 32>}, {pipeline_mode = #tpu.pipeline_mode<synchronous>, transform_indices = @transform_2, window_bounds = array<i64: 32, 2>}, {transform_indices = @transform_3, window_bounds = array<i64: 2, 32, 128>}]} {
    %c0 = arith.constant 0 : index
    %c0_0 = arith.constant 0 : index
    %c0_1 = arith.constant 0 : index
    %0 = vector.load %arg1[%c0, %c0_0, %c0_1] : memref<2x32x128xf32, #tpu.memory_space<vmem>>, vector<2x32x128xf32>
    %cst = arith.constant dense<0.000000e+00> : vector<2x32xf32>
    %1 = vector.multi_reduction <add>, %0, %cst [2] : vector<2x32x128xf32> to vector<2x32xf32>
    %cst_2 = arith.constant 1.280000e+02 : f32
    %2 = vector.broadcast %cst_2 : f32 to vector<2x32xf32>
    %3 = arith.divf %1, %2 : vector<2x32xf32>
    %c0_3 = arith.constant 0 : index
    %c0_4 = arith.constant 0 : index
    %4 = vector.load %arg2[%c0_3, %c0_4] : memref<2x32xf32, #tpu.memory_space<vmem>>, vector<2x32xf32>
    %c0_5 = arith.constant 0 : index
    %c0_6 = arith.constant 0 : index
    %5 = vector.load %arg3[%c0_5, %c0_6] : memref<32x2xf32, #tpu.memory_space<vmem>>, vector<32x2xf32>
    %6 = vector.shape_cast %3 : vector<2x32xf32> to vector<2x1x32xf32>
    %7 = vector.shape_cast %4 : vector<2x32xf32> to vector<1x2x32xf32>
    %8 = vector.broadcast %6 : vector<2x1x32xf32> to vector<2x2x32xf32>
    %9 = vector.broadcast %7 : vector<1x2x32xf32> to vector<2x2x32xf32>
    %10 = arith.mulf %8, %9 : vector<2x2x32xf32>
    %cst_7 = arith.constant dense<0.000000e+00> : vector<2x2xf32>
    %11 = vector.multi_reduction <add>, %10, %cst_7 [2] : vector<2x2x32xf32> to vector<2x2xf32>
    %cst_8 = arith.constant 0.000000e+00 : f32
    %12 = vector.broadcast %cst_8 : f32 to vector<2x2xf32>
    %13 = arith.maximumf %11, %12 : vector<2x2xf32>
    %14 = vector.shape_cast %13 : vector<2x2xf32> to vector<2x1x2xf32>
    %15 = vector.shape_cast %5 : vector<32x2xf32> to vector<1x32x2xf32>
    %16 = vector.broadcast %14 : vector<2x1x2xf32> to vector<2x32x2xf32>
    %17 = vector.broadcast %15 : vector<1x32x2xf32> to vector<2x32x2xf32>
    %18 = arith.mulf %16, %17 : vector<2x32x2xf32>
    %cst_9 = arith.constant dense<0.000000e+00> : vector<2x32xf32>
    %19 = vector.multi_reduction <add>, %18, %cst_9 [2] : vector<2x32x2xf32> to vector<2x32xf32>
    %20 = arith.negf %19 : vector<2x32xf32>
    %21 = math.exp %20 : vector<2x32xf32>
    %cst_10 = arith.constant 1.000000e+00 : f32
    %22 = vector.broadcast %cst_10 : f32 to vector<2x32xf32>
    %23 = arith.addf %22, %21 : vector<2x32xf32>
    %24 = arith.divf %22, %23 : vector<2x32xf32>
    %25 = vector.shape_cast %24 : vector<2x32xf32> to vector<2x32x1xf32>
    %26 = vector.broadcast %25 : vector<2x32x1xf32> to vector<2x32x128xf32>
    %27 = arith.mulf %0, %26 : vector<2x32x128xf32>
    %c0_11 = arith.constant 0 : index
    %c0_12 = arith.constant 0 : index
    %c0_13 = arith.constant 0 : index
    %28 = vector.load %arg4[%c0_11, %c0_12, %c0_13] : memref<2x32x128xf32, #tpu.memory_space<vmem>>, vector<2x32x128xf32>
    tpu.vector_store %arg4[%c0_11, %c0_12, %c0_13], %27 {strides = array<i32>} : memref<2x32x128xf32, #tpu.memory_space<vmem>>, vector<2x32x128xf32>,
    return
  }
  func.func @transform_0(%arg0: i32) -> (i32, i32, i32) {
    %c0_i32 = arith.constant 0 : i32
    %c0_i32_0 = arith.constant 0 : i32
    %c0_i32_1 = arith.constant 0 : i32
    return %arg0, %c0_i32, %c0_i32_0 : i32, i32, i32
  }
  func.func @transform_1(%arg0: i32) -> (i32, i32) {
    %c0_i32 = arith.constant 0 : i32
    %c0_i32_0 = arith.constant 0 : i32
    %c0_i32_1 = arith.constant 0 : i32
    return %c0_i32, %c0_i32_0 : i32, i32
  }
  func.func @transform_2(%arg0: i32) -> (i32, i32) {
    %c0_i32 = arith.constant 0 : i32
    %c0_i32_0 = arith.constant 0 : i32
    %c0_i32_1 = arith.constant 0 : i32
    return %c0_i32, %c0_i32_0 : i32, i32
  }
  func.func @transform_3(%arg0: i32) -> (i32, i32, i32) {
    %c0_i32 = arith.constant 0 : i32
    %c0_i32_0 = arith.constant 0 : i32
    %c0_i32_1 = arith.constant 0 : i32
    return %arg0, %c0_i32, %c0_i32_0 : i32, i32, i32
  }
}

</mosaic_0001>

<llo_original>
// kernel: tpu_custom_call.1
$region0: #{tpu_custom_call.1}
  #allocation0 [shape = 'u32[]', space=smem, size = 0x4, offset = 0x4, fixed_abs, tag = 'smem constant byte address 0x4 - core index']
  #allocation1 [shape = 'u32[144,128]{1,0:T(1,128)}', space=vmem, size = 0x12000, scoped, tag = 'internal scratch']
  %s0 = inlined_call_operand.hbm [shape: f32[2,32,128], index: 0, kind: input, shape index: {}]
  %s1 = inlined_call_operand.vmem [shape: f32[2,32], index: 1, kind: input, shape index: {}]
  %s2 = inlined_call_operand.vmem [shape: f32[32,2], index: 2, kind: input, shape index: {}]
  %s3 = inlined_call_operand.hbm [shape: f32[2,32,128], index: 3, kind: output, shape index: {}]
  %s4 = sld [smem:[#allocation0]]
  $region26: #{tpu_custom_call.1} parent=0
    _
  %s6 = ssub.s32 1, %s4
  %s7 = scalar_select 0, %s6, %s4
  $region1: #{tpu_custom_call.1} parent=0
    #allocation2 [shape = 'u8[32768]{0}', space=vmem, size = 0x8000, scoped, tag = 'input window, operand 0, single buffered']
    #allocation3 [shape = 's32[1]{0}', space=sflag, size = 0x4, scoped, tag = 'scoped memory for tpu_custom_call.1']
    #allocation4 [shape = 's32[1]{0}', space=sflag, size = 0x4, scoped, tag = 'scoped memory for tpu_custom_call.1']
    #allocation5 [shape = 'u8[32768]{0}', space=vmem, size = 0x8000, scoped, tag = 'output window, operand 0, single buffered']
    %8 = vsyncpa [#allocation3], 0
    %9 = vsyncpa [#allocation4], 0
    // Predicated region
    $region2: #{tpu_custom_call.1} parent=1 // pred_check
      _
    $region3: #{tpu_custom_call.1} parent=1 // pred_check_branch
      %11 = sbr.rel (0) target = $region5
    $region4: #{tpu_custom_call.1} parent=1 // pred_region
      %s13 = ssub.s32 1024, 1024
      %14 = vsyncadd [#allocation3], %s13
      %s15 = sshll.u32 [#allocation2], 4
      %s16 = int_to_ptr.vmem [resolvable:$true] %s15
      %21 = dma.hbm_to_vmem [thread:$0]  %s0, 1024, %s16, [#allocation3], 128, 128, 8
    $region5: #{tpu_custom_call.1} parent=1 // pred_fallthru
      _
    // Predicated region
    $region6: #{tpu_custom_call.1} parent=1 // pred_check
      _
    $region7: #{tpu_custom_call.1} parent=1 // pred_check_branch
      %23 = sbr.rel (0) target = $region9
    $region8: #{tpu_custom_call.1} parent=1 // pred_region
      _
    $region9: #{tpu_custom_call.1} parent=1 // pred_fallthru
      _
    // Predicated region
    $region10: #{tpu_custom_call.1} parent=1 // pred_check
      _
    $region11: #{tpu_custom_call.1} parent=1 // pred_check_branch
      %25 = sbr.rel (0) target = $region13
    $region12: #{tpu_custom_call.1} parent=1 // pred_region
      _
    $region13: #{tpu_custom_call.1} parent=1 // pred_fallthru
      _
    // Predicated region
    $region14: #{tpu_custom_call.1} parent=1 // pred_check
      _
    $region15: #{tpu_custom_call.1} parent=1 // pred_check_branch
      %27 = sbr.rel (0) target = $region17
    $region16: #{tpu_custom_call.1} parent=1 // pred_region
      %28 = dma.done [#allocation3], 1024
    $region17: #{tpu_custom_call.1} parent=1 // pred_fallthru
      _
    %v29 = vld [vmem:[#allocation2] sm:$0xff]
    %v30 = vld [vmem:[#allocation2 + $0x8] sm:$0xff]
    %v31 = vld [vmem:[#allocation2 + $0x10] sm:$0xff]
    %v32 = vld [vmem:[#allocation2 + $0x18] sm:$0xff]
    %v33 = vld [vmem:[#allocation2 + $0x20] sm:$0xff]
    %v34 = vld [vmem:[#allocation2 + $0x28] sm:$0xff]
    %v35 = vld [vmem:[#allocation2 + $0x30] sm:$0xff]
    %v36 = vld [vmem:[#allocation2 + $0x38] sm:$0xff]
    %37 = vadd.xlane.f32.xlu0 %v29
    %v38 = vpop.xlane.xlu0 %37
    %39 = vadd.xlane.f32.xlu0 %v30
    %v40 = vpop.xlane.xlu0 %39
    %41 = vadd.xlane.f32.xlu0 %v31
    %v42 = vpop.xlane.xlu0 %41
    %43 = vadd.xlane.f32.xlu0 %v32
    %v44 = vpop.xlane.xlu0 %43
    %45 = vadd.xlane.f32.xlu0 %v33
    %v46 = vpop.xlane.xlu0 %45
    %47 = vadd.xlane.f32.xlu0 %v34
    %v48 = vpop.xlane.xlu0 %47
    %49 = vadd.xlane.f32.xlu0 %v35
    %v50 = vpop.xlane.xlu0 %49
    %51 = vadd.xlane.f32.xlu0 %v36
    %v52 = vpop.xlane.xlu0 %51
    %v53 = vrcp.pop 128.0
    %v54 = vmul.f32 %v38, %v53
    %v55 = vmul.f32 %v40, %v53
    %v56 = vmul.f32 %v42, %v53
    %v57 = vmul.f32 %v44, %v53
    %v58 = vmul.f32 %v46, %v53
    %v59 = vmul.f32 %v48, %v53
    %v60 = vmul.f32 %v50, %v53
    %v61 = vmul.f32 %v52, %v53
    %v62 = vld [vmem:[%s1] sm:$0x3]
    %v63 = vld [vmem:[%s2] sm:$0xff]
    %v64 = vld [vmem:[%s2 + $0x8] sm:$0xff]
    %v65 = vld [vmem:[%s2 + $0x10] sm:$0xff]
    %v66 = vld [vmem:[%s2 + $0x18] sm:$0xff]
    %v68 = vlaneseq
    %v69 = vshrl.u32 %v68, 7
    %v70 = vsub.s32 0, %v69
    %v71 = vrot.slane %v62, %v70
    %73 = vbcast.lane.b32.xlu0 %v71, 256
    %v74 = vpop.permute.xlu0 %73
    %s76 = sor.u32 256, 8
    %77 = vbcast.lane.b32.xlu0 %v71, %s76
    %v78 = vpop.permute.xlu0 %77
    %s80 = sor.u32 256, 16
    %81 = vbcast.lane.b32.xlu0 %v71, %s80
    %v82 = vpop.permute.xlu0 %81
    %s84 = sor.u32 256, 24
    %85 = vbcast.lane.b32.xlu0 %v71, %s84
    %v86 = vpop.permute.xlu0 %85
    %v87 = vlaneseq
    %v88 = vshrl.u32 %v87, 7
    %v89 = vsub.s32 1, %v88
    %v90 = vrot.slane %v62, %v89
    %92 = vbcast.lane.b32.xlu0 %v90, 256
    %v93 = vpop.permute.xlu0 %92
    %s95 = sor.u32 256, 8
    %96 = vbcast.lane.b32.xlu0 %v90, %s95
    %v97 = vpop.permute.xlu0 %96
    %s99 = sor.u32 256, 16
    %100 = vbcast.lane.b32.xlu0 %v90, %s99
    %v101 = vpop.permute.xlu0 %100
    %s103 = sor.u32 256, 24
    %104 = vbcast.lane.b32.xlu0 %v90, %s103
    %v105 = vpop.permute.xlu0 %104
    %v114 = vmul.f32 %v54, %v74
    %v115 = vmul.f32 %v55, %v78
    %v116 = vmul.f32 %v56, %v82
    %v117 = vmul.f32 %v57, %v86
    %v118 = vmul.f32 %v54, %v93
    %v119 = vmul.f32 %v55, %v97
    %v120 = vmul.f32 %v56, %v101
    %v121 = vmul.f32 %v57, %v105
    %v122 = vmul.f32 %v58, %v74
    %v123 = vmul.f32 %v59, %v78
    %v124 = vmul.f32 %v60, %v82
    %v125 = vmul.f32 %v61, %v86
    %v126 = vmul.f32 %v58, %v93
    %v127 = vmul.f32 %v59, %v97
    %v128 = vmul.f32 %v60, %v101
    %v129 = vmul.f32 %v61, %v105
    %146 = vset.pattern.permute.xlu0 0
    %147 = vperm.xlu0 %146, %v114
    %v148 = vpop.permute.xlu0 %147
    %149 = vset.pattern.permute.xlu0 0
    %150 = vperm.xlu0 %149, %v115
    %v151 = vpop.permute.xlu0 %150
    %152 = vset.pattern.permute.xlu0 0
    %153 = vperm.xlu0 %152, %v116
    %v154 = vpop.permute.xlu0 %153
    %155 = vset.pattern.permute.xlu0 0
    %156 = vperm.xlu0 %155, %v117
    %v157 = vpop.permute.xlu0 %156
    %158 = vset.pattern.permute.xlu0 0
    %159 = vperm.xlu0 %158, %v118
    %v160 = vpop.permute.xlu0 %159
    %161 = vset.pattern.permute.xlu0 0
    %162 = vperm.xlu0 %161, %v119
    %v163 = vpop.permute.xlu0 %162
    %164 = vset.pattern.permute.xlu0 0
    %165 = vperm.xlu0 %164, %v120
    %v166 = vpop.permute.xlu0 %165
    %167 = vset.pattern.permute.xlu0 0
    %168 = vperm.xlu0 %167, %v121
    %v169 = vpop.permute.xlu0 %168
    %170 = vset.pattern.permute.xlu0 0
    %171 = vperm.xlu0 %170, %v122
    %v172 = vpop.permute.xlu0 %171
    %173 = vset.pattern.permute.xlu0 0
    %174 = vperm.xlu0 %173, %v123
    %v175 = vpop.permute.xlu0 %174
    %176 = vset.pattern.permute.xlu0 0
    %177 = vperm.xlu0 %176, %v124
    %v178 = vpop.permute.xlu0 %177
    %179 = vset.pattern.permute.xlu0 0
    %180 = vperm.xlu0 %179, %v125
    %v181 = vpop.permute.xlu0 %180
    %182 = vset.pattern.permute.xlu0 0
    %183 = vperm.xlu0 %182, %v126
    %v184 = vpop.permute.xlu0 %183
    %185 = vset.pattern.permute.xlu0 0
    %186 = vperm.xlu0 %185, %v127
    %v187 = vpop.permute.xlu0 %186
    %188 = vset.pattern.permute.xlu0 0
    %189 = vperm.xlu0 %188, %v128
    %v190 = vpop.permute.xlu0 %189
    %191 = vset.pattern.permute.xlu0 0
    %192 = vperm.xlu0 %191, %v129
    %v193 = vpop.permute.xlu0 %192
    %v194 = vlaneseq
    %v195 = vand.u32 %v194, 127
    %v196 = vlaneseq
    %v197 = vshrl.u32 %v196, 7
    %v198 = vsub.s32 %v195, %v197
    %v199 = vrot.slane %v148, %v198
    %v200 = vadd.s32 %v195, 4294967288
    %v201 = vlaneseq
    %v202 = vshrl.u32 %v201, 7
    %v203 = vsub.s32 %v200, %v202
    %v204 = vrot.slane %v151, %v203
    %vm205 = vcmask 130112
    %v206 = vsel %vm205, %v204, %v199
    %v207 = vadd.s32 %v195, 4294967280
    %v208 = vlaneseq
    %v209 = vshrl.u32 %v208, 7
    %v210 = vsub.s32 %v207, %v209
    %v211 = vrot.slane %v154, %v210
    %vm212 = vcmask 195712
    %v213 = vsel %vm212, %v211, %v206
    %v214 = vadd.s32 %v195, 4294967272
    %v215 = vlaneseq
    %v216 = vshrl.u32 %v215, 7
    %v217 = vsub.s32 %v214, %v216
    %v218 = vrot.slane %v157, %v217
    %vm219 = vcmask 261312
    %v220 = vsel %vm219, %v218, %v213
    %v221 = vlaneseq
    %v222 = vshrl.u32 %v221, 7
    %v223 = vsub.s32 %v195, %v222
    %v224 = vrot.slane %v160, %v223
    %v225 = vlaneseq
    %v226 = vshrl.u32 %v225, 7
    %v227 = vsub.s32 %v200, %v226
    %v228 = vrot.slane %v163, %v227
    %v229 = vsel %vm205, %v228, %v224
    %v230 = vlaneseq
    %v231 = vshrl.u32 %v230, 7
    %v232 = vsub.s32 %v207, %v231
    %v233 = vrot.slane %v166, %v232
    %v234 = vsel %vm212, %v233, %v229
    %v235 = vlaneseq
    %v236 = vshrl.u32 %v235, 7
    %v237 = vsub.s32 %v214, %v236
    %v238 = vrot.slane %v169, %v237
    %v239 = vsel %vm219, %v238, %v234
    %v240 = vlaneseq
    %v241 = vshrl.u32 %v240, 7
    %v242 = vsub.s32 %v195, %v241
    %v243 = vrot.slane %v172, %v242
    %v244 = vlaneseq
    %v245 = vshrl.u32 %v244, 7
    %v246 = vsub.s32 %v200, %v245
    %v247 = vrot.slane %v175, %v246
    %v248 = vsel %vm205, %v247, %v243
    %v249 = vlaneseq
    %v250 = vshrl.u32 %v249, 7
    %v251 = vsub.s32 %v207, %v250
    %v252 = vrot.slane %v178, %v251
    %v253 = vsel %vm212, %v252, %v248
    %v254 = vlaneseq
    %v255 = vshrl.u32 %v254, 7
    %v256 = vsub.s32 %v214, %v255
    %v257 = vrot.slane %v181, %v256
    %v258 = vsel %vm219, %v257, %v253
    %v259 = vlaneseq
    %v260 = vshrl.u32 %v259, 7
    %v261 = vsub.s32 %v195, %v260
    %v262 = vrot.slane %v184, %v261
    %v263 = vlaneseq
    %v264 = vshrl.u32 %v263, 7
    %v265 = vsub.s32 %v200, %v264
    %v266 = vrot.slane %v187, %v265
    %v267 = vsel %vm205, %v266, %v262
    %v268 = vlaneseq
    %v269 = vshrl.u32 %v268, 7
    %v270 = vsub.s32 %v207, %v269
    %v271 = vrot.slane %v190, %v270
    %v272 = vsel %vm212, %v271, %v267
    %v273 = vlaneseq
    %v274 = vshrl.u32 %v273, 7
    %v275 = vsub.s32 %v214, %v274
    %v276 = vrot.slane %v193, %v275
    %v277 = vsel %vm219, %v276, %v272
    %vm278 = vcmask 1041409
    %v279 = vsel %vm278, %v239, %v220
    %v280 = vsel %vm278, %v277, %v258
    %vm283 = vcmask 254976
    %v284 = vsel %vm283, %v279, 0.0
    %285 = vadd.xlane.f32.xlu0 %v284
    %v286 = vpop.xlane.xlu0 %285
    %v287 = vsel %vm283, %v280, 0.0
    %288 = vadd.xlane.f32.xlu0 %v287
    %v289 = vpop.xlane.xlu0 %288
    %v290 = vmax.f32 %v286, 0.0
    %v291 = vmax.f32 %v289, 0.0
    %v296 = vlaneseq
    %v297 = vshrl.u32 %v296, 7
    %v298 = vsub.s32 0, %v297
    %v299 = vrot.slane %v63, %v298
    %301 = vbcast.lane.b32.xlu0 %v299, 256
    %v302 = vpop.permute.xlu0 %301
    %v303 = vlaneseq
    %v304 = vshrl.u32 %v303, 7
    %v305 = vsub.s32 1, %v304
    %v306 = vrot.slane %v63, %v305
    %308 = vbcast.lane.b32.xlu0 %v306, 256
    %v309 = vpop.permute.xlu0 %308
    %v310 = vlaneseq
    %v311 = vshrl.u32 %v310, 7
    %v312 = vsub.s32 2, %v311
    %v313 = vrot.slane %v63, %v312
    %315 = vbcast.lane.b32.xlu0 %v313, 256
    %v316 = vpop.permute.xlu0 %315
    %v317 = vlaneseq
    %v318 = vshrl.u32 %v317, 7
    %v319 = vsub.s32 3, %v318
    %v320 = vrot.slane %v63, %v319
    %322 = vbcast.lane.b32.xlu0 %v320, 256
    %v323 = vpop.permute.xlu0 %322
    %v324 = vlaneseq
    %v325 = vshrl.u32 %v324, 7
    %v326 = vsub.s32 4, %v325
    %v327 = vrot.slane %v63, %v326
    %329 = vbcast.lane.b32.xlu0 %v327, 256
    %v330 = vpop.permute.xlu0 %329
    %v331 = vlaneseq
    %v332 = vshrl.u32 %v331, 7
    %v333 = vsub.s32 5, %v332
    %v334 = vrot.slane %v63, %v333
    %336 = vbcast.lane.b32.xlu0 %v334, 256
    %v337 = vpop.permute.xlu0 %336
    %v338 = vlaneseq
    %v339 = vshrl.u32 %v338, 7
    %v340 = vsub.s32 6, %v339
    %v341 = vrot.slane %v63, %v340
    %343 = vbcast.lane.b32.xlu0 %v341, 256
    %v344 = vpop.permute.xlu0 %343
    %v345 = vlaneseq
    %v346 = vshrl.u32 %v345, 7
    %v347 = vsub.s32 7, %v346
    %v348 = vrot.slane %v63, %v347
    %350 = vbcast.lane.b32.xlu0 %v348, 256
    %v351 = vpop.permute.xlu0 %350
    %v352 = vlaneseq
    %v353 = vshrl.u32 %v352, 7
    %v354 = vsub.s32 0, %v353
    %v355 = vrot.slane %v64, %v354
    %357 = vbcast.lane.b32.xlu0 %v355, 256
    %v358 = vpop.permute.xlu0 %357
    %v359 = vlaneseq
    %v360 = vshrl.u32 %v359, 7
    %v361 = vsub.s32 1, %v360
    %v362 = vrot.slane %v64, %v361
    %364 = vbcast.lane.b32.xlu0 %v362, 256
    %v365 = vpop.permute.xlu0 %364
    %v366 = vlaneseq
    %v367 = vshrl.u32 %v366, 7
    %v368 = vsub.s32 2, %v367
    %v369 = vrot.slane %v64, %v368
    %371 = vbcast.lane.b32.xlu0 %v369, 256
    %v372 = vpop.permute.xlu0 %371
    %v373 = vlaneseq
    %v374 = vshrl.u32 %v373, 7
    %v375 = vsub.s32 3, %v374
    %v376 = vrot.slane %v64, %v375
    %378 = vbcast.lane.b32.xlu0 %v376, 256
    %v379 = vpop.permute.xlu0 %378
    %v380 = vlaneseq
    %v381 = vshrl.u32 %v380, 7
    %v382 = vsub.s32 4, %v381
    %v383 = vrot.slane %v64, %v382
    %385 = vbcast.lane.b32.xlu0 %v383, 256
    %v386 = vpop.permute.xlu0 %385
    %v387 = vlaneseq
    %v388 = vshrl.u32 %v387, 7
    %v389 = vsub.s32 5, %v388
    %v390 = vrot.slane %v64, %v389
    %392 = vbcast.lane.b32.xlu0 %v390, 256
    %v393 = vpop.permute.xlu0 %392
    %v394 = vlaneseq
    %v395 = vshrl.u32 %v394, 7
    %v396 = vsub.s32 6, %v395
    %v397 = vrot.slane %v64, %v396
    %399 = vbcast.lane.b32.xlu0 %v397, 256
    %v400 = vpop.permute.xlu0 %399
    %v401 = vlaneseq
    %v402 = vshrl.u32 %v401, 7
    %v403 = vsub.s32 7, %v402
    %v404 = vrot.slane %v64, %v403
    %406 = vbcast.lane.b32.xlu0 %v404, 256
    %v407 = vpop.permute.xlu0 %406
    %v408 = vlaneseq
    %v409 = vshrl.u32 %v408, 7
    %v410 = vsub.s32 0, %v409
    %v411 = vrot.slane %v65, %v410
    %413 = vbcast.lane.b32.xlu0 %v411, 256
    %v414 = vpop.permute.xlu0 %413
    %v415 = vlaneseq
    %v416 = vshrl.u32 %v415, 7
    %v417 = vsub.s32 1, %v416
    %v418 = vrot.slane %v65, %v417
    %420 = vbcast.lane.b32.xlu0 %v418, 256
    %v421 = vpop.permute.xlu0 %420
    %v422 = vlaneseq
    %v423 = vshrl.u32 %v422, 7
    %v424 = vsub.s32 2, %v423
    %v425 = vrot.slane %v65, %v424
    %427 = vbcast.lane.b32.xlu0 %v425, 256
    %v428 = vpop.permute.xlu0 %427
    %v429 = vlaneseq
    %v430 = vshrl.u32 %v429, 7
    %v431 = vsub.s32 3, %v430
    %v432 = vrot.slane %v65, %v431
    %434 = vbcast.lane.b32.xlu0 %v432, 256
    %v435 = vpop.permute.xlu0 %434
    %v436 = vlaneseq
    %v437 = vshrl.u32 %v436, 7
    %v438 = vsub.s32 4, %v437
    %v439 = vrot.slane %v65, %v438
    %441 = vbcast.lane.b32.xlu0 %v439, 256
    %v442 = vpop.permute.xlu0 %441
    %v443 = vlaneseq
    %v444 = vshrl.u32 %v443, 7
    %v445 = vsub.s32 5, %v444
    %v446 = vrot.slane %v65, %v445
    %448 = vbcast.lane.b32.xlu0 %v446, 256
    %v449 = vpop.permute.xlu0 %448
    %v450 = vlaneseq
    %v451 = vshrl.u32 %v450, 7
    %v452 = vsub.s32 6, %v451
    %v453 = vrot.slane %v65, %v452
    %455 = vbcast.lane.b32.xlu0 %v453, 256
    %v456 = vpop.permute.xlu0 %455
    %v457 = vlaneseq
    %v458 = vshrl.u32 %v457, 7
    %v459 = vsub.s32 7, %v458
    %v460 = vrot.slane %v65, %v459
    %462 = vbcast.lane.b32.xlu0 %v460, 256
    %v463 = vpop.permute.xlu0 %462
    %v464 = vlaneseq
    %v465 = vshrl.u32 %v464, 7
    %v466 = vsub.s32 0, %v465
    %v467 = vrot.slane %v66, %v466
    %469 = vbcast.lane.b32.xlu0 %v467, 256
    %v470 = vpop.permute.xlu0 %469
    %v471 = vlaneseq
    %v472 = vshrl.u32 %v471, 7
    %v473 = vsub.s32 1, %v472
    %v474 = vrot.slane %v66, %v473
    %476 = vbcast.lane.b32.xlu0 %v474, 256
    %v477 = vpop.permute.xlu0 %476
    %v478 = vlaneseq
    %v479 = vshrl.u32 %v478, 7
    %v480 = vsub.s32 2, %v479
    %v481 = vrot.slane %v66, %v480
    %483 = vbcast.lane.b32.xlu0 %v481, 256
    %v484 = vpop.permute.xlu0 %483
    %v485 = vlaneseq
    %v486 = vshrl.u32 %v485, 7
    %v487 = vsub.s32 3, %v486
    %v488 = vrot.slane %v66, %v487
    %490 = vbcast.lane.b32.xlu0 %v488, 256
    %v491 = vpop.permute.xlu0 %490
    %v492 = vlaneseq
    %v493 = vshrl.u32 %v492, 7
    %v494 = vsub.s32 4, %v493
    %v495 = vrot.slane %v66, %v494
    %497 = vbcast.lane.b32.xlu0 %v495, 256
    %v498 = vpop.permute.xlu0 %497
    %v499 = vlaneseq
    %v500 = vshrl.u32 %v499, 7
    %v501 = vsub.s32 5, %v500
    %v502 = vrot.slane %v66, %v501
    %504 = vbcast.lane.b32.xlu0 %v502, 256
    %v505 = vpop.permute.xlu0 %504
    %v506 = vlaneseq
    %v507 = vshrl.u32 %v506, 7
    %v508 = vsub.s32 6, %v507
    %v509 = vrot.slane %v66, %v508
    %511 = vbcast.lane.b32.xlu0 %v509, 256
    %v512 = vpop.permute.xlu0 %511
    %v513 = vlaneseq
    %v514 = vshrl.u32 %v513, 7
    %v515 = vsub.s32 7, %v514
    %v516 = vrot.slane %v66, %v515
    %518 = vbcast.lane.b32.xlu0 %v516, 256
    %v519 = vpop.permute.xlu0 %518
    %v552 = vmul.f32 %v290, %v302
    %v553 = vmul.f32 %v290, %v309
    %v554 = vmul.f32 %v290, %v316
    %v555 = vmul.f32 %v290, %v323
    %v556 = vmul.f32 %v290, %v330
    %v557 = vmul.f32 %v290, %v337
    %v558 = vmul.f32 %v290, %v344
    %v559 = vmul.f32 %v290, %v351
    %v560 = vmul.f32 %v290, %v358
    %v561 = vmul.f32 %v290, %v365
    %v562 = vmul.f32 %v290, %v372
    %v563 = vmul.f32 %v290, %v379
    %v564 = vmul.f32 %v290, %v386
    %v565 = vmul.f32 %v290, %v393
    %v566 = vmul.f32 %v290, %v400
    %v567 = vmul.f32 %v290, %v407
    %v568 = vmul.f32 %v290, %v414
    %v569 = vmul.f32 %v290, %v421
    %v570 = vmul.f32 %v290, %v428
    %v571 = vmul.f32 %v290, %v435
    %v572 = vmul.f32 %v290, %v442
    %v573 = vmul.f32 %v290, %v449
    %v574 = vmul.f32 %v290, %v456
    %v575 = vmul.f32 %v290, %v463
    %v576 = vmul.f32 %v290, %v470
    %v577 = vmul.f32 %v290, %v477
    %v578 = vmul.f32 %v290, %v484
    %v579 = vmul.f32 %v290, %v491
    %v580 = vmul.f32 %v290, %v498
    %v581 = vmul.f32 %v290, %v505
    %v582 = vmul.f32 %v290, %v512
    %v583 = vmul.f32 %v290, %v519
    %v584 = vmul.f32 %v291, %v302
    %v585 = vmul.f32 %v291, %v309
    %v586 = vmul.f32 %v291, %v316
    %v587 = vmul.f32 %v291, %v323
    %v588 = vmul.f32 %v291, %v330
    %v589 = vmul.f32 %v291, %v337
    %v590 = vmul.f32 %v291, %v344
    %v591 = vmul.f32 %v291, %v351
    %v592 = vmul.f32 %v291, %v358
    %v593 = vmul.f32 %v291, %v365
    %v594 = vmul.f32 %v291, %v372
    %v595 = vmul.f32 %v291, %v379
    %v596 = vmul.f32 %v291, %v386
    %v597 = vmul.f32 %v291, %v393
    %v598 = vmul.f32 %v291, %v400
    %v599 = vmul.f32 %v291, %v407
    %v600 = vmul.f32 %v291, %v414
    %v601 = vmul.f32 %v291, %v421
    %v602 = vmul.f32 %v291, %v428
    %v603 = vmul.f32 %v291, %v435
    %v604 = vmul.f32 %v291, %v442
    %v605 = vmul.f32 %v291, %v449
    %v606 = vmul.f32 %v291, %v456
    %v607 = vmul.f32 %v291, %v463
    %v608 = vmul.f32 %v291, %v470
    %v609 = vmul.f32 %v291, %v477
    %v610 = vmul.f32 %v291, %v484
    %v611 = vmul.f32 %v291, %v491
    %v612 = vmul.f32 %v291, %v498
    %v613 = vmul.f32 %v291, %v505
    %v614 = vmul.f32 %v291, %v512
    %v615 = vmul.f32 %v291, %v519
    %680 = vset.pattern.permute.xlu0 0
    %681 = vperm.xlu0 %680, %v552
    %v682 = vpop.permute.xlu0 %681
    %683 = vset.pattern.permute.xlu0 0
    %684 = vperm.xlu0 %683, %v553
    %v685 = vpop.permute.xlu0 %684
    %686 = vset.pattern.permute.xlu0 0
    %687 = vperm.xlu0 %686, %v554
    %v688 = vpop.permute.xlu0 %687
    %689 = vset.pattern.permute.xlu0 0
    %690 = vperm.xlu0 %689, %v555
    %v691 = vpop.permute.xlu0 %690
    %692 = vset.pattern.permute.xlu0 0
    %693 = vperm.xlu0 %692, %v556
    %v694 = vpop.permute.xlu0 %693
    %695 = vset.pattern.permute.xlu0 0
    %696 = vperm.xlu0 %695, %v557
    %v697 = vpop.permute.xlu0 %696
    %698 = vset.pattern.permute.xlu0 0
    %699 = vperm.xlu0 %698, %v558
    %v700 = vpop.permute.xlu0 %699
    %701 = vset.pattern.permute.xlu0 0
    %702 = vperm.xlu0 %701, %v559
    %v703 = vpop.permute.xlu0 %702
    %704 = vset.pattern.permute.xlu0 0
    %705 = vperm.xlu0 %704, %v560
    %v706 = vpop.permute.xlu0 %705
    %707 = vset.pattern.permute.xlu0 0
    %708 = vperm.xlu0 %707, %v561
    %v709 = vpop.permute.xlu0 %708
    %710 = vset.pattern.permute.xlu0 0
    %711 = vperm.xlu0 %710, %v562
    %v712 = vpop.permute.xlu0 %711
    %713 = vset.pattern.permute.xlu0 0
    %714 = vperm.xlu0 %713, %v563
    %v715 = vpop.permute.xlu0 %714
    %716 = vset.pattern.permute.xlu0 0
    %717 = vperm.xlu0 %716, %v564
    %v718 = vpop.permute.xlu0 %717
    %719 = vset.pattern.permute.xlu0 0
    %720 = vperm.xlu0 %719, %v565
    %v721 = vpop.permute.xlu0 %720
    %722 = vset.pattern.permute.xlu0 0
    %723 = vperm.xlu0 %722, %v566
    %v724 = vpop.permute.xlu0 %723
    %725 = vset.pattern.permute.xlu0 0
    %726 = vperm.xlu0 %725, %v567
    %v727 = vpop.permute.xlu0 %726
    %728 = vset.pattern.permute.xlu0 0
    %729 = vperm.xlu0 %728, %v568
    %v730 = vpop.permute.xlu0 %729
    %731 = vset.pattern.permute.xlu0 0
    %732 = vperm.xlu0 %731, %v569
    %v733 = vpop.permute.xlu0 %732
    %734 = vset.pattern.permute.xlu0 0
    %735 = vperm.xlu0 %734, %v570
    %v736 = vpop.permute.xlu0 %735
    %737 = vset.pattern.permute.xlu0 0
    %738 = vperm.xlu0 %737, %v571
    %v739 = vpop.permute.xlu0 %738
    %740 = vset.pattern.permute.xlu0 0
    %741 = vperm.xlu0 %740, %v572
    %v742 = vpop.permute.xlu0 %741
    %743 = vset.pattern.permute.xlu0 0
    %744 = vperm.xlu0 %743, %v573
    %v745 = vpop.permute.xlu0 %744
    %746 = vset.pattern.permute.xlu0 0
    %747 = vperm.xlu0 %746, %v574
    %v748 = vpop.permute.xlu0 %747
    %749 = vset.pattern.permute.xlu0 0
    %750 = vperm.xlu0 %749, %v575
    %v751 = vpop.permute.xlu0 %750
    %752 = vset.pattern.permute.xlu0 0
    %753 = vperm.xlu0 %752, %v576
    %v754 = vpop.permute.xlu0 %753
    %755 = vset.pattern.permute.xlu0 0
    %756 = vperm.xlu0 %755, %v577
    %v757 = vpop.permute.xlu0 %756
    %758 = vset.pattern.permute.xlu0 0
    %759 = vperm.xlu0 %758, %v578
    %v760 = vpop.permute.xlu0 %759
    %761 = vset.pattern.permute.xlu0 0
    %762 = vperm.xlu0 %761, %v579
    %v763 = vpop.permute.xlu0 %762
    %764 = vset.pattern.permute.xlu0 0
    %765 = vperm.xlu0 %764, %v580
    %v766 = vpop.permute.xlu0 %765
    %767 = vset.pattern.permute.xlu0 0
    %768 = vperm.xlu0 %767, %v581
    %v769 = vpop.permute.xlu0 %768
    %770 = vset.pattern.permute.xlu0 0
    %771 = vperm.xlu0 %770, %v582
    %v772 = vpop.permute.xlu0 %771
    %773 = vset.pattern.permute.xlu0 0
    %774 = vperm.xlu0 %773, %v583
    %v775 = vpop.permute.xlu0 %774
    %776 = vset.pattern.permute.xlu0 0
    %777 = vperm.xlu0 %776, %v584
    %v778 = vpop.permute.xlu0 %777
    %779 = vset.pattern.permute.xlu0 0
    %780 = vperm.xlu0 %779, %v585
    %v781 = vpop.permute.xlu0 %780
    %782 = vset.pattern.permute.xlu0 0
    %783 = vperm.xlu0 %782, %v586
    %v784 = vpop.permute.xlu0 %783
    %785 = vset.pattern.permute.xlu0 0
    %786 = vperm.xlu0 %785, %v587
    %v787 = vpop.permute.xlu0 %786
    %788 = vset.pattern.permute.xlu0 0
    %789 = vperm.xlu0 %788, %v588
    %v790 = vpop.permute.xlu0 %789
    %791 = vset.pattern.permute.xlu0 0
    %792 = vperm.xlu0 %791, %v589
    %v793 = vpop.permute.xlu0 %792
    %794 = vset.pattern.permute.xlu0 0
    %795 = vperm.xlu0 %794, %v590
    %v796 = vpop.permute.xlu0 %795
    %797 = vset.pattern.permute.xlu0 0
    %798 = vperm.xlu0 %797, %v591
    %v799 = vpop.permute.xlu0 %798
    %800 = vset.pattern.permute.xlu0 0
    %801 = vperm.xlu0 %800, %v592
    %v802 = vpop.permute.xlu0 %801
    %803 = vset.pattern.permute.xlu0 0
    %804 = vperm.xlu0 %803, %v593
    %v805 = vpop.permute.xlu0 %804
    %806 = vset.pattern.permute.xlu0 0
    %807 = vperm.xlu0 %806, %v594
    %v808 = vpop.permute.xlu0 %807
    %809 = vset.pattern.permute.xlu0 0
    %810 = vperm.xlu0 %809, %v595
    %v811 = vpop.permute.xlu0 %810
    %812 = vset.pattern.permute.xlu0 0
    %813 = vperm.xlu0 %812, %v596
    %v814 = vpop.permute.xlu0 %813
    %815 = vset.pattern.permute.xlu0 0
    %816 = vperm.xlu0 %815, %v597
    %v817 = vpop.permute.xlu0 %816
    %818 = vset.pattern.permute.xlu0 0
    %819 = vperm.xlu0 %818, %v598
    %v820 = vpop.permute.xlu0 %819
    %821 = vset.pattern.permute.xlu0 0
    %822 = vperm.xlu0 %821, %v599
    %v823 = vpop.permute.xlu0 %822
    %824 = vset.pattern.permute.xlu0 0
    %825 = vperm.xlu0 %824, %v600
    %v826 = vpop.permute.xlu0 %825
    %827 = vset.pattern.permute.xlu0 0
    %828 = vperm.xlu0 %827, %v601
    %v829 = vpop.permute.xlu0 %828
    %830 = vset.pattern.permute.xlu0 0
    %831 = vperm.xlu0 %830, %v602
    %v832 = vpop.permute.xlu0 %831
    %833 = vset.pattern.permute.xlu0 0
    %834 = vperm.xlu0 %833, %v603
    %v835 = vpop.permute.xlu0 %834
    %836 = vset.pattern.permute.xlu0 0
    %837 = vperm.xlu0 %836, %v604
    %v838 = vpop.permute.xlu0 %837
    %839 = vset.pattern.permute.xlu0 0
    %840 = vperm.xlu0 %839, %v605
    %v841 = vpop.permute.xlu0 %840
    %842 = vset.pattern.permute.xlu0 0
    %843 = vperm.xlu0 %842, %v606
    %v844 = vpop.permute.xlu0 %843
    %845 = vset.pattern.permute.xlu0 0
    %846 = vperm.xlu0 %845, %v607
    %v847 = vpop.permute.xlu0 %846
    %848 = vset.pattern.permute.xlu0 0
    %849 = vperm.xlu0 %848, %v608
    %v850 = vpop.permute.xlu0 %849
    %851 = vset.pattern.permute.xlu0 0
    %852 = vperm.xlu0 %851, %v609
    %v853 = vpop.permute.xlu0 %852
    %854 = vset.pattern.permute.xlu0 0
    %855 = vperm.xlu0 %854, %v610
    %v856 = vpop.permute.xlu0 %855
    %857 = vset.pattern.permute.xlu0 0
    %858 = vperm.xlu0 %857, %v611
    %v859 = vpop.permute.xlu0 %858
    %860 = vset.pattern.permute.xlu0 0
    %861 = vperm.xlu0 %860, %v612
    %v862 = vpop.permute.xlu0 %861
    %863 = vset.pattern.permute.xlu0 0
    %864 = vperm.xlu0 %863, %v613
    %v865 = vpop.permute.xlu0 %864
    %866 = vset.pattern.permute.xlu0 0
    %867 = vperm.xlu0 %866, %v614
    %v868 = vpop.permute.xlu0 %867
    %869 = vset.pattern.permute.xlu0 0
    %870 = vperm.xlu0 %869, %v615
    %v871 = vpop.permute.xlu0 %870
    %v872 = vlaneseq
    %v873 = vshrl.u32 %v872, 7
    %v874 = vsub.s32 %v195, %v873
    %v875 = vrot.slane %v682, %v874
    %v876 = vlaneseq
    %v877 = vshrl.u32 %v876, 7
    %v878 = vsub.s32 %v195, %v877
    %v879 = vrot.slane %v685, %v878
    %v880 = vlaneseq
    %v881 = vshrl.u32 %v880, 7
    %v882 = vsub.s32 %v195, %v881
    %v883 = vrot.slane %v688, %v882
    %v884 = vlaneseq
    %v885 = vshrl.u32 %v884, 7
    %v886 = vsub.s32 %v195, %v885
    %v887 = vrot.slane %v691, %v886
    %v888 = vlaneseq
    %v889 = vshrl.u32 %v888, 7
    %v890 = vsub.s32 %v195, %v889
    %v891 = vrot.slane %v694, %v890
    %v892 = vlaneseq
    %v893 = vshrl.u32 %v892, 7
    %v894 = vsub.s32 %v195, %v893
    %v895 = vrot.slane %v697, %v894
    %v896 = vlaneseq
    %v897 = vshrl.u32 %v896, 7
    %v898 = vsub.s32 %v195, %v897
    %v899 = vrot.slane %v700, %v898
    %v900 = vlaneseq
    %v901 = vshrl.u32 %v900, 7
    %v902 = vsub.s32 %v195, %v901
    %v903 = vrot.slane %v703, %v902
    %v904 = vlaneseq
    %v905 = vshrl.u32 %v904, 7
    %v906 = vsub.s32 %v195, %v905
    %v907 = vrot.slane %v706, %v906
    %v908 = vlaneseq
    %v909 = vshrl.u32 %v908, 7
    %v910 = vsub.s32 %v195, %v909
    %v911 = vrot.slane %v709, %v910
    %v912 = vlaneseq
    %v913 = vshrl.u32 %v912, 7
    %v914 = vsub.s32 %v195, %v913
    %v915 = vrot.slane %v712, %v914
    %v916 = vlaneseq
    %v917 = vshrl.u32 %v916, 7
    %v918 = vsub.s32 %v195, %v917
    %v919 = vrot.slane %v715, %v918
    %v920 = vlaneseq
    %v921 = vshrl.u32 %v920, 7
    %v922 = vsub.s32 %v195, %v921
    %v923 = vrot.slane %v718, %v922
    %v924 = vlaneseq
    %v925 = vshrl.u32 %v924, 7
    %v926 = vsub.s32 %v195, %v925
    %v927 = vrot.slane %v721, %v926
    %v928 = vlaneseq
    %v929 = vshrl.u32 %v928, 7
    %v930 = vsub.s32 %v195, %v929
    %v931 = vrot.slane %v724, %v930
    %v932 = vlaneseq
    %v933 = vshrl.u32 %v932, 7
    %v934 = vsub.s32 %v195, %v933
    %v935 = vrot.slane %v727, %v934
    %v936 = vlaneseq
    %v937 = vshrl.u32 %v936, 7
    %v938 = vsub.s32 %v195, %v937
    %v939 = vrot.slane %v730, %v938
    %v940 = vlaneseq
    %v941 = vshrl.u32 %v940, 7
    %v942 = vsub.s32 %v195, %v941
    %v943 = vrot.slane %v733, %v942
    %v944 = vlaneseq
    %v945 = vshrl.u32 %v944, 7
    %v946 = vsub.s32 %v195, %v945
    %v947 = vrot.slane %v736, %v946
    %v948 = vlaneseq
    %v949 = vshrl.u32 %v948, 7
    %v950 = vsub.s32 %v195, %v949
    %v951 = vrot.slane %v739, %v950
    %v952 = vlaneseq
    %v953 = vshrl.u32 %v952, 7
    %v954 = vsub.s32 %v195, %v953
    %v955 = vrot.slane %v742, %v954
    %v956 = vlaneseq
    %v957 = vshrl.u32 %v956, 7
    %v958 = vsub.s32 %v195, %v957
    %v959 = vrot.slane %v745, %v958
    %v960 = vlaneseq
    %v961 = vshrl.u32 %v960, 7
    %v962 = vsub.s32 %v195, %v961
    %v963 = vrot.slane %v748, %v962
    %v964 = vlaneseq
    %v965 = vshrl.u32 %v964, 7
    %v966 = vsub.s32 %v195, %v965
    %v967 = vrot.slane %v751, %v966
    %v968 = vlaneseq
    %v969 = vshrl.u32 %v968, 7
    %v970 = vsub.s32 %v195, %v969
    %v971 = vrot.slane %v754, %v970
    %v972 = vlaneseq
    %v973 = vshrl.u32 %v972, 7
    %v974 = vsub.s32 %v195, %v973
    %v975 = vrot.slane %v757, %v974
    %v976 = vlaneseq
    %v977 = vshrl.u32 %v976, 7
    %v978 = vsub.s32 %v195, %v977
    %v979 = vrot.slane %v760, %v978
    %v980 = vlaneseq
    %v981 = vshrl.u32 %v980, 7
    %v982 = vsub.s32 %v195, %v981
    %v983 = vrot.slane %v763, %v982
    %v984 = vlaneseq
    %v985 = vshrl.u32 %v984, 7
    %v986 = vsub.s32 %v195, %v985
    %v987 = vrot.slane %v766, %v986
    %v988 = vlaneseq
    %v989 = vshrl.u32 %v988, 7
    %v990 = vsub.s32 %v195, %v989
    %v991 = vrot.slane %v769, %v990
    %v992 = vlaneseq
    %v993 = vshrl.u32 %v992, 7
    %v994 = vsub.s32 %v195, %v993
    %v995 = vrot.slane %v772, %v994
    %v996 = vlaneseq
    %v997 = vshrl.u32 %v996, 7
    %v998 = vsub.s32 %v195, %v997
    %v999 = vrot.slane %v775, %v998
    %v1000 = vlaneseq
    %v1001 = vshrl.u32 %v1000, 7
    %v1002 = vsub.s32 %v195, %v1001
    %v1003 = vrot.slane %v778, %v1002
    %v1004 = vlaneseq
    %v1005 = vshrl.u32 %v1004, 7
    %v1006 = vsub.s32 %v195, %v1005
    %v1007 = vrot.slane %v781, %v1006
    %v1008 = vlaneseq
    %v1009 = vshrl.u32 %v1008, 7
    %v1010 = vsub.s32 %v195, %v1009
    %v1011 = vrot.slane %v784, %v1010
    %v1012 = vlaneseq
    %v1013 = vshrl.u32 %v1012, 7
    %v1014 = vsub.s32 %v195, %v1013
    %v1015 = vrot.slane %v787, %v1014
    %v1016 = vlaneseq
    %v1017 = vshrl.u32 %v1016, 7
    %v1018 = vsub.s32 %v195, %v1017
    %v1019 = vrot.slane %v790, %v1018
    %v1020 = vlaneseq
    %v1021 = vshrl.u32 %v1020, 7
    %v1022 = vsub.s32 %v195, %v1021
    %v1023 = vrot.slane %v793, %v1022
    %v1024 = vlaneseq
    %v1025 = vshrl.u32 %v1024, 7
    %v1026 = vsub.s32 %v195, %v1025
    %v1027 = vrot.slane %v796, %v1026
    %v1028 = vlaneseq
    %v1029 = vshrl.u32 %v1028, 7
    %v1030 = vsub.s32 %v195, %v1029
    %v1031 = vrot.slane %v799, %v1030
    %v1032 = vlaneseq
    %v1033 = vshrl.u32 %v1032, 7
    %v1034 = vsub.s32 %v195, %v1033
    %v1035 = vrot.slane %v802, %v1034
    %v1036 = vlaneseq
    %v1037 = vshrl.u32 %v1036, 7
    %v1038 = vsub.s32 %v195, %v1037
    %v1039 = vrot.slane %v805, %v1038
    %v1040 = vlaneseq
    %v1041 = vshrl.u32 %v1040, 7
    %v1042 = vsub.s32 %v195, %v1041
    %v1043 = vrot.slane %v808, %v1042
    %v1044 = vlaneseq
    %v1045 = vshrl.u32 %v1044, 7
    %v1046 = vsub.s32 %v195, %v1045
    %v1047 = vrot.slane %v811, %v1046
    %v1048 = vlaneseq
    %v1049 = vshrl.u32 %v1048, 7
    %v1050 = vsub.s32 %v195, %v1049
    %v1051 = vrot.slane %v814, %v1050
    %v1052 = vlaneseq
    %v1053 = vshrl.u32 %v1052, 7
    %v1054 = vsub.s32 %v195, %v1053
    %v1055 = vrot.slane %v817, %v1054
    %v1056 = vlaneseq
    %v1057 = vshrl.u32 %v1056, 7
    %v1058 = vsub.s32 %v195, %v1057
    %v1059 = vrot.slane %v820, %v1058
    %v1060 = vlaneseq
    %v1061 = vshrl.u32 %v1060, 7
    %v1062 = vsub.s32 %v195, %v1061
    %v1063 = vrot.slane %v823, %v1062
    %v1064 = vlaneseq
    %v1065 = vshrl.u32 %v1064, 7
    %v1066 = vsub.s32 %v195, %v1065
    %v1067 = vrot.slane %v826, %v1066
    %v1068 = vlaneseq
    %v1069 = vshrl.u32 %v1068, 7
    %v1070 = vsub.s32 %v195, %v1069
    %v1071 = vrot.slane %v829, %v1070
    %v1072 = vlaneseq
    %v1073 = vshrl.u32 %v1072, 7
    %v1074 = vsub.s32 %v195, %v1073
    %v1075 = vrot.slane %v832, %v1074
    %v1076 = vlaneseq
    %v1077 = vshrl.u32 %v1076, 7
    %v1078 = vsub.s32 %v195, %v1077
    %v1079 = vrot.slane %v835, %v1078
    %v1080 = vlaneseq
    %v1081 = vshrl.u32 %v1080, 7
    %v1082 = vsub.s32 %v195, %v1081
    %v1083 = vrot.slane %v838, %v1082
    %v1084 = vlaneseq
    %v1085 = vshrl.u32 %v1084, 7
    %v1086 = vsub.s32 %v195, %v1085
    %v1087 = vrot.slane %v841, %v1086
    %v1088 = vlaneseq
    %v1089 = vshrl.u32 %v1088, 7
    %v1090 = vsub.s32 %v195, %v1089
    %v1091 = vrot.slane %v844, %v1090
    %v1092 = vlaneseq
    %v1093 = vshrl.u32 %v1092, 7
    %v1094 = vsub.s32 %v195, %v1093
    %v1095 = vrot.slane %v847, %v1094
    %v1096 = vlaneseq
    %v1097 = vshrl.u32 %v1096, 7
    %v1098 = vsub.s32 %v195, %v1097
    %v1099 = vrot.slane %v850, %v1098
    %v1100 = vlaneseq
    %v1101 = vshrl.u32 %v1100, 7
    %v1102 = vsub.s32 %v195, %v1101
    %v1103 = vrot.slane %v853, %v1102
    %v1104 = vlaneseq
    %v1105 = vshrl.u32 %v1104, 7
    %v1106 = vsub.s32 %v195, %v1105
    %v1107 = vrot.slane %v856, %v1106
    %v1108 = vlaneseq
    %v1109 = vshrl.u32 %v1108, 7
    %v1110 = vsub.s32 %v195, %v1109
    %v1111 = vrot.slane %v859, %v1110
    %v1112 = vlaneseq
    %v1113 = vshrl.u32 %v1112, 7
    %v1114 = vsub.s32 %v195, %v1113
    %v1115 = vrot.slane %v862, %v1114
    %v1116 = vlaneseq
    %v1117 = vshrl.u32 %v1116, 7
    %v1118 = vsub.s32 %v195, %v1117
    %v1119 = vrot.slane %v865, %v1118
    %v1120 = vlaneseq
    %v1121 = vshrl.u32 %v1120, 7
    %v1122 = vsub.s32 %v195, %v1121
    %v1123 = vrot.slane %v868, %v1122
    %v1124 = vlaneseq
    %v1125 = vshrl.u32 %v1124, 7
    %v1126 = vsub.s32 %v195, %v1125
    %v1127 = vrot.slane %v871, %v1126
    %v1128 = vsel %vm278, %v879, %v875
    %vm1129 = vcmask 1042434
    %v1130 = vsel %vm1129, %v883, %v1128
    %vm1131 = vcmask 1043459
    %v1132 = vsel %vm1131, %v887, %v1130
    %vm1133 = vcmask 1044484
    %v1134 = vsel %vm1133, %v891, %v1132
    %vm1135 = vcmask 1045509
    %v1136 = vsel %vm1135, %v895, %v1134
    %vm1137 = vcmask 1046534
    %v1138 = vsel %vm1137, %v899, %v1136
    %vm1139 = vcmask 1047559
    %v1140 = vsel %vm1139, %v903, %v1138
    %v1141 = vsel %vm278, %v911, %v907
    %v1142 = vsel %vm1129, %v915, %v1141
    %v1143 = vsel %vm1131, %v919, %v1142
    %v1144 = vsel %vm1133, %v923, %v1143
    %v1145 = vsel %vm1135, %v927, %v1144
    %v1146 = vsel %vm1137, %v931, %v1145
    %v1147 = vsel %vm1139, %v935, %v1146
    %v1148 = vsel %vm278, %v943, %v939
    %v1149 = vsel %vm1129, %v947, %v1148
    %v1150 = vsel %vm1131, %v951, %v1149
    %v1151 = vsel %vm1133, %v955, %v1150
    %v1152 = vsel %vm1135, %v959, %v1151
    %v1153 = vsel %vm1137, %v963, %v1152
    %v1154 = vsel %vm1139, %v967, %v1153
    %v1155 = vsel %vm278, %v975, %v971
    %v1156 = vsel %vm1129, %v979, %v1155
    %v1157 = vsel %vm1131, %v983, %v1156
    %v1158 = vsel %vm1133, %v987, %v1157
    %v1159 = vsel %vm1135, %v991, %v1158
    %v1160 = vsel %vm1137, %v995, %v1159
    %v1161 = vsel %vm1139, %v999, %v1160
    %v1162 = vsel %vm278, %v1007, %v1003
    %v1163 = vsel %vm1129, %v1011, %v1162
    %v1164 = vsel %vm1131, %v1015, %v1163
    %v1165 = vsel %vm1133, %v1019, %v1164
    %v1166 = vsel %vm1135, %v1023, %v1165
    %v1167 = vsel %vm1137, %v1027, %v1166
    %v1168 = vsel %vm1139, %v1031, %v1167
    %v1169 = vsel %vm278, %v1039, %v1035
    %v1170 = vsel %vm1129, %v1043, %v1169
    %v1171 = vsel %vm1131, %v1047, %v1170
    %v1172 = vsel %vm1133, %v1051, %v1171
    %v1173 = vsel %vm1135, %v1055, %v1172
    %v1174 = vsel %vm1137, %v1059, %v1173
    %v1175 = vsel %vm1139, %v1063, %v1174
    %v1176 = vsel %vm278, %v1071, %v1067
    %v1177 = vsel %vm1129, %v1075, %v1176
    %v1178 = vsel %vm1131, %v1079, %v1177
    %v1179 = vsel %vm1133, %v1083, %v1178
    %v1180 = vsel %vm1135, %v1087, %v1179
    %v1181 = vsel %vm1137, %v1091, %v1180
    %v1182 = vsel %vm1139, %v1095, %v1181
    %v1183 = vsel %vm278, %v1103, %v1099
    %v1184 = vsel %vm1129, %v1107, %v1183
    %v1185 = vsel %vm1131, %v1111, %v1184
    %v1186 = vsel %vm1133, %v1115, %v1185
    %v1187 = vsel %vm1135, %v1119, %v1186
    %v1188 = vsel %vm1137, %v1123, %v1187
    %v1189 = vsel %vm1139, %v1127, %v1188
    %vm1198 = vcmask 15360
    %v1199 = vsel %vm1198, %v1140, 0.0
    %1200 = vadd.xlane.f32.xlu0 %v1199
    %v1201 = vpop.xlane.xlu0 %1200
    %v1202 = vsel %vm1198, %v1147, 0.0
    %1203 = vadd.xlane.f32.xlu0 %v1202
    %v1204 = vpop.xlane.xlu0 %1203
    %v1205 = vsel %vm1198, %v1154, 0.0
    %1206 = vadd.xlane.f32.xlu0 %v1205
    %v1207 = vpop.xlane.xlu0 %1206
    %v1208 = vsel %vm1198, %v1161, 0.0
    %1209 = vadd.xlane.f32.xlu0 %v1208
    %v1210 = vpop.xlane.xlu0 %1209
    %v1211 = vsel %vm1198, %v1168, 0.0
    %1212 = vadd.xlane.f32.xlu0 %v1211
    %v1213 = vpop.xlane.xlu0 %1212
    %v1214 = vsel %vm1198, %v1175, 0.0
    %1215 = vadd.xlane.f32.xlu0 %v1214
    %v1216 = vpop.xlane.xlu0 %1215
    %v1217 = vsel %vm1198, %v1182, 0.0
    %1218 = vadd.xlane.f32.xlu0 %v1217
    %v1219 = vpop.xlane.xlu0 %1218
    %v1220 = vsel %vm1198, %v1189, 0.0
    %1221 = vadd.xlane.f32.xlu0 %v1220
    %v1222 = vpop.xlane.xlu0 %1221
    %v1223 = vxor.u32 %v1201, 2147483648
    %v1224 = vxor.u32 %v1204, 2147483648
    %v1225 = vxor.u32 %v1207, 2147483648
    %v1226 = vxor.u32 %v1210, 2147483648
    %v1227 = vxor.u32 %v1213, 2147483648
    %v1228 = vxor.u32 %v1216, 2147483648
    %v1229 = vxor.u32 %v1219, 2147483648
    %v1230 = vxor.u32 %v1222, 2147483648
    %v1231 = vmul.f32 %v1223, 1.442695
    %v1232 = vpow.pop %v1231
    %v1233 = vmul.f32 %v1224, 1.442695
    %v1234 = vpow.pop %v1233
    %v1235 = vmul.f32 %v1225, 1.442695
    %v1236 = vpow.pop %v1235
    %v1237 = vmul.f32 %v1226, 1.442695
    %v1238 = vpow.pop %v1237
    %v1239 = vmul.f32 %v1227, 1.442695
    %v1240 = vpow.pop %v1239
    %v1241 = vmul.f32 %v1228, 1.442695
    %v1242 = vpow.pop %v1241
    %v1243 = vmul.f32 %v1229, 1.442695
    %v1244 = vpow.pop %v1243
    %v1245 = vmul.f32 %v1230, 1.442695
    %v1246 = vpow.pop %v1245
    %v1247 = vadd.f32 %v1232, 1.0
    %v1248 = vadd.f32 %v1234, 1.0
    %v1249 = vadd.f32 %v1236, 1.0
    %v1250 = vadd.f32 %v1238, 1.0
    %v1251 = vadd.f32 %v1240, 1.0
    %v1252 = vadd.f32 %v1242, 1.0
    %v1253 = vadd.f32 %v1244, 1.0
    %v1254 = vadd.f32 %v1246, 1.0
    %v1255 = vrcp.pop %v1247
    %v1256 = vmul.f32 1.0, %v1255
    %v1257 = vrcp.pop %v1248
    %v1258 = vmul.f32 1.0, %v1257
    %v1259 = vrcp.pop %v1249
    %v1260 = vmul.f32 1.0, %v1259
    %v1261 = vrcp.pop %v1250
    %v1262 = vmul.f32 1.0, %v1261
    %v1263 = vrcp.pop %v1251
    %v1264 = vmul.f32 1.0, %v1263
    %v1265 = vrcp.pop %v1252
    %v1266 = vmul.f32 1.0, %v1265
    %v1267 = vrcp.pop %v1253
    %v1268 = vmul.f32 1.0, %v1267
    %v1269 = vrcp.pop %v1254
    %v1270 = vmul.f32 1.0, %v1269
    %v1271 = vmul.f32 %v29, %v1256
    %v1272 = vmul.f32 %v30, %v1258
    %v1273 = vmul.f32 %v31, %v1260
    %v1274 = vmul.f32 %v32, %v1262
    %v1275 = vmul.f32 %v33, %v1264
    %v1276 = vmul.f32 %v34, %v1266
    %v1277 = vmul.f32 %v35, %v1268
    %v1278 = vmul.f32 %v36, %v1270
    %1279 = vst [vmem:[#allocation5] sm:$0xff] %v1271
    %1280 = vst [vmem:[#allocation5 + $0x8] sm:$0xff] %v1272
    %1281 = vst [vmem:[#allocation5 + $0x10] sm:$0xff] %v1273
    %1282 = vst [vmem:[#allocation5 + $0x18] sm:$0xff] %v1274
    %1283 = vst [vmem:[#allocation5 + $0x20] sm:$0xff] %v1275
    %1284 = vst [vmem:[#allocation5 + $0x28] sm:$0xff] %v1276
    %1285 = vst [vmem:[#allocation5 + $0x30] sm:$0xff] %v1277
    %1286 = vst [vmem:[#allocation5 + $0x38] sm:$0xff] %v1278
    // Predicated region
    $region18: #{tpu_custom_call.1} parent=1 // pred_check
      _
    $region19: #{tpu_custom_call.1} parent=1 // pred_check_branch
      %1288 = sbr.rel (0) target = $region21
    $region20: #{tpu_custom_call.1} parent=1 // pred_region
      %s1290 = ssub.s32 1024, 1024
      %1291 = vsyncadd [#allocation4], %s1290
      %s1292 = sshll.u32 [#allocation5], 4
      %s1293 = int_to_ptr.vmem [resolvable:$true] %s1292
      %1298 = dma.vmem_to_hbm [thread:$0]  %s1293, 1024, %s3, [#allocation4], 128, 128, 8
    $region21: #{tpu_custom_call.1} parent=1 // pred_fallthru
      _
    // Predicated region
    $region22: #{tpu_custom_call.1} parent=1 // pred_check
      _
    $region23: #{tpu_custom_call.1} parent=1 // pred_check_branch
      %1300 = sbr.rel (0) target = $region25
    $region24: #{tpu_custom_call.1} parent=1 // pred_region
      %1301 = dma.done [#allocation4], 1024
    $region25: #{tpu_custom_call.1} parent=1 // pred_fallthru
      _
    %1302 = vsyncpa [#allocation3], 1
    %1303 = vsyncpa [#allocation4], 1

</llo_original>
